<compile_context>
chip_gen: v6e
topology: v6e:2x2x1
jax: 0.10.0
libtpu: 0.0.40
codegen_flags: <defaults>
</compile_context>

<pallas_src>
import functools

import jax
import jax.numpy as jnp
from jax.experimental import pallas as pl
from jax.experimental.pallas import tpu as pltpu

CONFIG = {"compressed_dim": 16, "qnet_dim": 64}

LANE = 128  # lane-dense width for the hidden layer / packed weight slab


def _round_up(x, m):
    return (x + m - 1) // m * m


def qnet_kernel(x_ref, w_ref, b_ref, o_ref, *, k_pad, out_dim):
    # x_ref: (TB, K)            f32   batch tile (cast to bf16 in-kernel)
    # w_ref: (k_pad + 128, 128) bf16  packed [W1 (rows 0:k_pad) ; W2 (rows k_pad:k_pad+128)]
    # b_ref: (2, 128)           f32   packed [b1 ; b2] (padded lanes are exactly zero)
    # o_ref: (TB, out_dim)      f32   exact-width output (no post-kernel slice needed)
    x = x_ref[...].astype(jnp.bfloat16)           # in-kernel cast: free VALU slot
    if x.shape[1] < k_pad:                        # static; no-op when K % 16 == 0
        x = jnp.pad(x, ((0, 0), (0, k_pad - x.shape[1])))

    w1 = w_ref[0:k_pad, :]                        # tile-aligned slice (k_pad % 16 == 0)
    w2 = w_ref[k_pad:k_pad + LANE, :]             # tile-aligned slice
    b1 = b_ref[0:1, :]
    b2 = b_ref[1:2, :]

    h = jnp.dot(x, w1, preferred_element_type=jnp.float32) + b1   # MXU, f32 accumulate
    h = jnp.maximum(h, 0.0)                                       # f32 ReLU on VPU
    q = jnp.dot(h.astype(jnp.bfloat16), w2,
                preferred_element_type=jnp.float32) + b2
    o_ref[...] = q[:, :out_dim]                                   # narrow f32 store


def pack_qnet_params(w1, b1, w2, b2):
    """Zero-pad to lane-dense widths, 16-row-align W2's offset, pack 4 tensors into 2 inputs.

    Invariant (correctness): padded lanes of b1 and padded rows of w2 are exactly zero,
    so the padded hidden lanes never leak into q.
    """
    k, h = w1.shape
    n = w2.shape[1]
    assert h <= LANE and n <= LANE, "qnet_dim / action_dim must be <= 128"
    k_pad = _round_up(k, 16)  # bf16 sublane tile alignment for the W2 slice offset
    w1p = jnp.pad(jnp.asarray(w1, jnp.float32), ((0, k_pad - k), (0, LANE - h)))
    w2p = jnp.pad(jnp.asarray(w2, jnp.float32), ((0, LANE - h), (0, LANE - n)))
    b1p = jnp.pad(jnp.asarray(b1, jnp.float32).reshape(1, -1), ((0, 0), (0, LANE - h)))
    b2p = jnp.pad(jnp.asarray(b2, jnp.float32).reshape(1, -1), ((0, 0), (0, LANE - n)))
    w_packed = jnp.concatenate([w1p, w2p], axis=0).astype(jnp.bfloat16)  # (k_pad+128, 128)
    b_packed = jnp.concatenate([b1p, b2p], axis=0)                       # (2, 128) f32
    return w_packed, b_packed


@functools.partial(jax.jit, static_argnames=("action_dim", "tile_b"))
def qnetwork_forward(x, w_packed, b_packed, *, action_dim, tile_b=512):
    """Pallas forward for QNetwork. x: (B, compressed_dim) f32 -> (B, action_dim) f32."""
    B, K = x.shape
    k_pad = _round_up(K, 16)
    assert w_packed.shape == (k_pad + LANE, LANE)

    # Batch tile: multiple of the f32 sublane granule (8/16); ensure >= 2 grid steps when
    # B >= 32 so dimension_semantics=("parallel",) actually uses both TCs on v7x.
    if B >= 32:
        tb = min(_round_up(tile_b, 16), _round_up(-(-B // 2), 16))
    else:
        tb = _round_up(max(B, 1), 8)
    grid = (pl.cdiv(B, tb),)  # ragged last block: out-of-range output rows masked on write

    flops = 2 * B * (k_pad * LANE + LANE * LANE)
    bytes_accessed = (B * K * 4                       # x (f32 read)
                      + (k_pad + LANE) * LANE * 2     # packed bf16 weights (read once)
                      + 2 * LANE * 4                  # packed f32 biases
                      + B * action_dim * 4)           # exact-width f32 output

    out = pl.pallas_call(
        functools.partial(qnet_kernel, k_pad=k_pad, out_dim=action_dim),
        out_shape=jax.ShapeDtypeStruct((B, action_dim), jnp.float32),
        grid=grid,
        in_specs=[
            pl.BlockSpec((tb, K), lambda i: (i, 0)),            # batch-tiled activations
            pl.BlockSpec((k_pad + LANE, LANE), lambda i: (0, 0)),  # weights: VMEM-resident
            pl.BlockSpec((2, LANE), lambda i: (0, 0)),          # biases: VMEM-resident
        ],
        out_specs=pl.BlockSpec((tb, action_dim), lambda i: (i, 0)),
        compiler_params=pltpu.CompilerParams(
            dimension_semantics=("parallel",)),                 # 2x TCs on v7x when grid >= 2
        cost_estimate=pl.CostEstimate(flops=flops, transcendentals=0,
                                      bytes_accessed=bytes_accessed),
    )(x, w_packed, b_packed)
    return out


def init_qnetwork_params(key, compressed_dim, action_dim, qnet_dim):
    """Deterministic init mimicking PyTorch nn.Linear default U[-1/sqrt(fan_in), +1/sqrt(fan_in)]."""
    k1, k2, k3, k4 = jax.random.split(key, 4)
    bound1 = 1.0 / jnp.sqrt(jnp.float32(compressed_dim))
    bound2 = 1.0 / jnp.sqrt(jnp.float32(qnet_dim))
    w1 = jax.random.uniform(k1, (compressed_dim, qnet_dim), jnp.float32, -bound1, bound1)
    b1 = jax.random.uniform(k2, (qnet_dim,), jnp.float32, -bound1, bound1)
    w2 = jax.random.uniform(k3, (qnet_dim, action_dim), jnp.float32, -bound2, bound2)
    b2 = jax.random.uniform(k4, (action_dim,), jnp.float32, -bound2, bound2)
    return w1, b1, w2, b2


if __name__ == "__main__":
    key = jax.random.PRNGKey(0)
    compressed_dim = CONFIG["compressed_dim"]   # 16
    qnet_dim = CONFIG["qnet_dim"]               # 64
    action_dim = 4

    kp, kx1, kx2 = jax.random.split(key, 3)
    w1, b1, w2, b2 = init_qnetwork_params(kp, compressed_dim, action_dim, qnet_dim)
    w_packed, b_packed = pack_qnet_params(w1, b1, w2, b2)

    # config batch_size=64 (grid=2 -> both TCs on v7x), plus a small ragged-ish batch.
    for batch, kx in ((64, kx1), (8, kx2)):
        x = jax.random.normal(kx, (batch, compressed_dim), jnp.float32)
        out = qnetwork_forward(x, w_packed, b_packed, action_dim=action_dim)
        out = jax.block_until_ready(out)
        assert out.shape == (batch, action_dim)
        assert out.dtype == jnp.float32

        # Reference with identical bf16 quantization (checks the kernel math itself).
        xb = x.astype(jnp.bfloat16).astype(jnp.float32)
        w1b = w1.astype(jnp.bfloat16).astype(jnp.float32)
        w2b = w2.astype(jnp.bfloat16).astype(jnp.float32)
        hq = jnp.maximum(xb @ w1b + b1[None, :], 0.0)
        ref_bf16 = hq.astype(jnp.bfloat16).astype(jnp.float32) @ w2b + b2[None, :]
        assert jnp.allclose(out, ref_bf16, atol=2e-3, rtol=2e-3)

        # Loose sanity check against the exact f32 nn.Sequential forward.
        # NOTE: bf16 matmuls are an intentional accuracy trade; fine for action selection.
        ref_f32 = jnp.maximum(x @ w1 + b1[None, :], 0.0) @ w2 + b2[None, :]
        assert jnp.allclose(out, ref_f32, atol=1e-1, rtol=1e-1)

    print("KERNEL_OK")
</pallas_src>

<mosaic_0001>
module attributes {stable_mosaic.version = 11 : i64} {
  func.func @qnet_kernel(%arg0: i32, %arg1: memref<32x16xf32, #tpu.memory_space<vmem>>, %arg2: memref<144x128xbf16, #tpu.memory_space<vmem>>, %arg3: memref<2x128xf32, #tpu.memory_space<vmem>>, %arg4: memref<32x4xf32, #tpu.memory_space<vmem>>) attributes {dimension_semantics = [#tpu.dimension_semantics<parallel>], iteration_bounds = array<i64: 2>, scalar_prefetch = 0 : i64, scratch_operands = 0 : i64, tpu.core_type = #tpu.core_type<tc>, window_params = [{transform_indices = @transform_0, window_bounds = array<i64: 32, 16>}, {pipeline_mode = #tpu.pipeline_mode<synchronous>, transform_indices = @transform_1, window_bounds = array<i64: 144, 128>}, {pipeline_mode = #tpu.pipeline_mode<synchronous>, transform_indices = @transform_2, window_bounds = array<i64: 2, 128>}, {transform_indices = @transform_3, window_bounds = array<i64: 32, 4>}]} {
    %c0 = arith.constant 0 : index
    %c0_0 = arith.constant 0 : index
    %0 = vector.load %arg1[%c0, %c0_0] : memref<32x16xf32, #tpu.memory_space<vmem>>, vector<32x16xf32>
    %1 = arith.truncf %0 : vector<32x16xf32> to vector<32x16xbf16>
    %c0_1 = arith.constant 0 : index
    %c0_2 = arith.constant 0 : index
    %2 = vector.load %arg2[%c0_1, %c0_2] : memref<144x128xbf16, #tpu.memory_space<vmem>>, vector<16x128xbf16>
    %c16 = arith.constant 16 : index
    %c0_3 = arith.constant 0 : index
    %3 = vector.load %arg2[%c16, %c0_3] : memref<144x128xbf16, #tpu.memory_space<vmem>>, vector<128x128xbf16>
    %c0_4 = arith.constant 0 : index
    %c0_5 = arith.constant 0 : index
    %4 = vector.load %arg3[%c0_4, %c0_5] : memref<2x128xf32, #tpu.memory_space<vmem>>, vector<1x128xf32>
    %c1 = arith.constant 1 : index
    %c0_6 = arith.constant 0 : index
    %5 = vector.load %arg3[%c1, %c0_6] : memref<2x128xf32, #tpu.memory_space<vmem>>, vector<1x128xf32>
    %cst = arith.constant dense<0.000000e+00> : vector<32x128xf32>
    %6 = tpu.matmul %1, %2, %cst {dimension_numbers = #tpu.dot_dimension_numbers<[1], [0], [0], [1], [0, 0, 1, 1], [], []>} : vector<32x16xbf16>, vector<16x128xbf16>, vector<32x128xf32> -> vector<32x128xf32>
    %7 = vector.broadcast %4 : vector<1x128xf32> to vector<32x128xf32>
    %8 = arith.addf %6, %7 : vector<32x128xf32>
    %cst_7 = arith.constant 0.000000e+00 : f32
    %9 = vector.broadcast %cst_7 : f32 to vector<32x128xf32>
    %10 = arith.maximumf %8, %9 : vector<32x128xf32>
    %11 = arith.truncf %10 : vector<32x128xf32> to vector<32x128xbf16>
    %cst_8 = arith.constant dense<0.000000e+00> : vector<32x128xf32>
    %12 = tpu.matmul %11, %3, %cst_8 {dimension_numbers = #tpu.dot_dimension_numbers<[1], [0], [0], [1], [0, 0, 1, 1], [], []>} : vector<32x128xbf16>, vector<128x128xbf16>, vector<32x128xf32> -> vector<32x128xf32>
    %13 = vector.broadcast %5 : vector<1x128xf32> to vector<32x128xf32>
    %14 = arith.addf %12, %13 : vector<32x128xf32>
    %15 = vector.extract_strided_slice %14 {offsets = [0, 0], sizes = [32, 4], strides = [1, 1]} : vector<32x128xf32> to vector<32x4xf32>
    %c0_9 = arith.constant 0 : index
    %c0_10 = arith.constant 0 : index
    %16 = vector.load %arg4[%c0_9, %c0_10] : memref<32x4xf32, #tpu.memory_space<vmem>>, vector<32x4xf32>
    tpu.vector_store %arg4[%c0_9, %c0_10], %15 {strides = array<i32>} : memref<32x4xf32, #tpu.memory_space<vmem>>, vector<32x4xf32>,
    return
  }
  func.func @transform_0(%arg0: i32) -> (i32, i32) {
    %c0_i32 = arith.constant 0 : i32
    %c0_i32_0 = arith.constant 0 : i32
    return %arg0, %c0_i32 : i32, i32
  }
  func.func @transform_1(%arg0: i32) -> (i32, i32) {
    %c0_i32 = arith.constant 0 : i32
    %c0_i32_0 = arith.constant 0 : i32
    %c0_i32_1 = arith.constant 0 : i32
    return %c0_i32, %c0_i32_0 : i32, i32
  }
  func.func @transform_2(%arg0: i32) -> (i32, i32) {
    %c0_i32 = arith.constant 0 : i32
    %c0_i32_0 = arith.constant 0 : i32
    %c0_i32_1 = arith.constant 0 : i32
    return %c0_i32, %c0_i32_0 : i32, i32
  }
  func.func @transform_3(%arg0: i32) -> (i32, i32) {
    %c0_i32 = arith.constant 0 : i32
    %c0_i32_0 = arith.constant 0 : i32
    return %arg0, %c0_i32 : i32, i32
  }
}

</mosaic_0001>

<llo_original>
// kernel: qnetwork_forward.1
$region0: #{qnetwork_forward.1}
  #allocation0 [shape = 'u32[]', space=smem, size = 0x4, offset = 0x4, fixed_abs, tag = 'smem constant byte address 0x4 - core index']
  #allocation1 [shape = 'u32[144,128]{1,0:T(1,128)}', space=vmem, size = 0x12000, scoped, tag = 'internal scratch']
  %s0 = inlined_call_operand.vmem [shape: f32[64,16], index: 0, kind: input, shape index: {}]
  %s1 = inlined_call_operand.vmem [shape: bf16[144,128], index: 1, kind: input, shape index: {}]
  %s2 = inlined_call_operand.vmem [shape: f32[2,128], index: 2, kind: input, shape index: {}]
  %s3 = inlined_call_operand.vmem [shape: f32[64,4], index: 3, kind: output, shape index: {}]
  %s4 = sld [smem:[#allocation0]]
  $region45: #{qnetwork_forward.1} parent=0
    _
  %s6 = ssub.s32 1, %s4
  %s7 = scalar_select 0, %s6, %s4
  loop: start=0, step=1, limit=4
  $region2: #{qnetwork_forward.1} parent=0 // loop_pre_header
    _
  $region3: #{qnetwork_forward.1} parent=0 // loop_header
    %s9 = sphi 0, %s13
    %p10 = scmp.ge.s32.totalorder %s9, 4
    %s19 = sphi 0, %s21
    %s22 = sphi 0, %s19
    %s23 = sphi 0, %s22
    %s39 = sphi 0, %s23
    %s43 = sphi 0, %s43
    %s45 = sphi 0, %s43
    %s46 = sphi 0, %s45
    %s60 = sphi 0, %s46
    %s64 = sphi 0, %s64
    %s66 = sphi 0, %s64
    %s67 = sphi 0, %s66
    %s81 = sphi 0, %s67
    %s87 = sphi 0, %s89
    %s90 = sphi 0, %s87
    %s91 = sphi 0, %s90
    %s107 = sphi 0, %s91
  $region4: #{qnetwork_forward.1} parent=0 // loop_header_branch
    %12 = sbr.rel (%p10) target = $region8
  $region5: #{qnetwork_forward.1} parent=0 // loop_body
    %s14 = ssub.s32 %s9, 1
    %s15 = ssub.s32 %s9, 2
    %s16 = sadd.s32 %s9, 1
    %s17 = ssub.s32 %s9, %s16
    %p18 = scmp.eq.s32.totalorder %s17, 0
    %s20 = sadd.s32 %s19, 1
    %s21 = scalar_select %p18, %s19, %s20
    %p24 = pneg %p18
    %p25 = scmp.eq.s32.totalorder %s9, 1
    %p26 = por %p24, %p25
    %p27 = scmp.ne.s32.totalorder %s19, %s22
    %p28 = scmp.eq.s32.totalorder %s9, 0
    %p29 = por %p27, %p28
    %p30 = scmp.ne.s32.totalorder %s19, %s22
    %p31 = scmp.eq.s32.totalorder %s14, 1
    %p32 = por %p30, %p31
    %p33 = scmp.ne.s32.totalorder %s22, %s23
    %p34 = scmp.eq.s32.totalorder %s14, 0
    %p35 = por %p33, %p34
    %p36 = scmp.ne.s32.totalorder %s22, %s23
    %p37 = scmp.eq.s32.totalorder %s15, 1
    %p38 = por %p36, %p37
    %p40 = scmp.ne.s32.totalorder %s23, %s39
    %p41 = scmp.eq.s32.totalorder %s15, 0
    %p42 = por %p40, %p41
    %s44 = sadd.s32 %s43, 1
    %p47 = scmp.eq.s32.totalorder %s9, 1
    %p48 = scmp.ne.s32.totalorder %s43, %s45
    %p49 = scmp.eq.s32.totalorder %s9, 0
    %p50 = por %p48, %p49
    %p51 = scmp.ne.s32.totalorder %s43, %s45
    %p52 = scmp.eq.s32.totalorder %s14, 1
    %p53 = por %p51, %p52
    %p54 = scmp.ne.s32.totalorder %s45, %s46
    %p55 = scmp.eq.s32.totalorder %s14, 0
    %p56 = por %p54, %p55
    %p57 = scmp.ne.s32.totalorder %s45, %s46
    %p58 = scmp.eq.s32.totalorder %s15, 1
    %p59 = por %p57, %p58
    %p61 = scmp.ne.s32.totalorder %s46, %s60
    %p62 = scmp.eq.s32.totalorder %s15, 0
    %p63 = por %p61, %p62
    %s65 = sadd.s32 %s64, 1
    %p68 = scmp.eq.s32.totalorder %s9, 1
    %p69 = scmp.ne.s32.totalorder %s64, %s66
    %p70 = scmp.eq.s32.totalorder %s9, 0
    %p71 = por %p69, %p70
    %p72 = scmp.ne.s32.totalorder %s64, %s66
    %p73 = scmp.eq.s32.totalorder %s14, 1
    %p74 = por %p72, %p73
    %p75 = scmp.ne.s32.totalorder %s66, %s67
    %p76 = scmp.eq.s32.totalorder %s14, 0
    %p77 = por %p75, %p76
    %p78 = scmp.ne.s32.totalorder %s66, %s67
    %p79 = scmp.eq.s32.totalorder %s15, 1
    %p80 = por %p78, %p79
    %p82 = scmp.ne.s32.totalorder %s67, %s81
    %p83 = scmp.eq.s32.totalorder %s15, 0
    %p84 = por %p82, %p83
    %s85 = ssub.s32 %s9, %s16
    %p86 = scmp.eq.s32.totalorder %s85, 0
    %s88 = sadd.s32 %s87, 1
    %s89 = scalar_select %p86, %s87, %s88
    %p92 = pneg %p86
    %p93 = scmp.eq.s32.totalorder %s9, 1
    %p94 = por %p92, %p93
    %p95 = scmp.ne.s32.totalorder %s87, %s90
    %p96 = scmp.eq.s32.totalorder %s9, 0
    %p97 = por %p95, %p96
    %p98 = scmp.ne.s32.totalorder %s87, %s90
    %p99 = scmp.eq.s32.totalorder %s14, 1
    %p100 = por %p98, %p99
    %p101 = scmp.ne.s32.totalorder %s90, %s91
    %p102 = scmp.eq.s32.totalorder %s14, 0
    %p103 = por %p101, %p102
    %p104 = scmp.ne.s32.totalorder %s90, %s91
    %p105 = scmp.eq.s32.totalorder %s15, 1
    %p106 = por %p104, %p105
    %p108 = scmp.ne.s32.totalorder %s91, %s107
    %p109 = scmp.eq.s32.totalorder %s15, 0
    %p110 = por %p108, %p109
    %p111 = scmp.le.s32.totalorder 1, %s9
    %p112 = scmp.lt.s32.totalorder %s9, 3
    %p113 = pnand %p111, %p112
    %p114 = pneg %p113
    // Predicated region
    $region9: #{qnetwork_forward.1} parent=5 // pred_check
      _
    $region10: #{qnetwork_forward.1} parent=5 // pred_check_branch
      %116 = sbr.rel (%p113) target = $region12
    $region11: #{qnetwork_forward.1} parent=5 // pred_region
      %s117 = ssub.s32 %s9, 1
      // Predicated region
      $region13: #{qnetwork_forward.1} parent=11 // pred_check
        %p118 = pneg %p56
      $region14: #{qnetwork_forward.1} parent=11 // pred_check_branch
        %120 = sbr.rel (%p118) target = $region16
      $region15: #{qnetwork_forward.1} parent=11 // pred_region
        _
      $region16: #{qnetwork_forward.1} parent=11 // pred_fallthru
        _
      // Predicated region
      $region17: #{qnetwork_forward.1} parent=11 // pred_check
        %p121 = pneg %p77
      $region18: #{qnetwork_forward.1} parent=11 // pred_check_branch
        %123 = sbr.rel (%p121) target = $region20
      $region19: #{qnetwork_forward.1} parent=11 // pred_region
        _
      $region20: #{qnetwork_forward.1} parent=11 // pred_fallthru
        _
    $region12: #{qnetwork_forward.1} parent=5 // pred_fallthru
      _
    %p124 = scmp.lt.s32.totalorder %s9, 2
    // Predicated region
    $region21: #{qnetwork_forward.1} parent=5 // pred_check
      %p125 = pneg %p124
    $region22: #{qnetwork_forward.1} parent=5 // pred_check_branch
      %127 = sbr.rel (%p125) target = $region24
    $region23: #{qnetwork_forward.1} parent=5 // pred_region
      // Predicated region
      $region25: #{qnetwork_forward.1} parent=23 // pred_check
        %p128 = pneg %p29
      $region26: #{qnetwork_forward.1} parent=23 // pred_check_branch
        %130 = sbr.rel (%p128) target = $region28
      $region27: #{qnetwork_forward.1} parent=23 // pred_region
        %s131 = smul.u32 4, %s9
        %p132 = scmp.lt.s32.totalorder %s131, 7
        %s133 = scalar_select %p132, %s131, 7
        %s134 = smul.addr %s133, 8
        %s135 = scalar_lea.vmem %s0, %s134
        %s136 = smul.u32 4, %s9
      $region28: #{qnetwork_forward.1} parent=23 // pred_fallthru
        _
    $region24: #{qnetwork_forward.1} parent=5 // pred_fallthru
      _
    %p137 = scmp.le.s32.totalorder 1, %s9
    %p138 = scmp.lt.s32.totalorder %s9, 3
    %p139 = pnand %p137, %p138
    %p140 = pneg %p139
    // Predicated region
    $region29: #{qnetwork_forward.1} parent=5 // pred_check
      _
    $region30: #{qnetwork_forward.1} parent=5 // pred_check_branch
      %142 = sbr.rel (%p139) target = $region32
    $region31: #{qnetwork_forward.1} parent=5 // pred_region
      %s143 = ssub.s32 %s9, 1
      %s144 = smul.u32 4, %s14
      %p145 = scmp.lt.s32.totalorder %s144, 7
      %s146 = scalar_select %p145, %s144, 7
      %s147 = smul.addr %s146, 8
      %s148 = scalar_lea.vmem %s0, %s147
      %p149 = pneg %p35
      %p150 = pneg %p32
      %p151 = pneg %p56
      %p152 = pneg %p53
      %p153 = pneg %p77
      %p154 = pneg %p74
      %p155 = pneg %p103
      %p156 = pneg %p100
      %s157 = smul.u32 4, %s14
      %p158 = scmp.lt.s32.totalorder %s157, 7
      %s159 = scalar_select %p158, %s157, 7
      %s160 = smul.addr %s159, 8
      %s161 = scalar_lea.vmem %s3, %s160
      %s162 = smul.u32 4, %s14
      %p163 = scmp.lt.s32.totalorder %s162, 7
      %s164 = scalar_select %p163, %s162, 7
      %s165 = smul.addr %s164, 8
      %s166 = scalar_lea.vmem %s0, %s165
      %s167 = smul.u32 4, %s14
      %s168 = smul.u32 4, %s14
      %p169 = scmp.lt.s32.totalorder %s168, 7
      %s170 = scalar_select %p169, %s168, 7
      %s171 = smul.addr %s170, 8
      %s172 = scalar_lea.vmem %s3, %s171
      %s173 = smul.u32 4, %s14
      %v175 = vld [vmem:[%s166] sm:$0xff]
      %v176 = vld [vmem:[%s166 + $0x8] sm:$0xff]
      %v177 = vld [vmem:[%s166 + $0x10] sm:$0xff]
      %v178 = vld [vmem:[%s166 + $0x18] sm:$0xff]
      %v179 = vpack.c.bf16 %v176, %v175
      %v180 = vpack.c.bf16 %v178, %v177
      %v181 = vld [vmem:[%s1] sm:$0xf]
      %v182 = vld [vmem:[%s1 + $0x4] sm:$0xf]
      %v183 = vld [vmem:[%s1 + $0x8] sm:$0xf]
      %v184 = vld [vmem:[%s1 + $0xc] sm:$0xf]
      %v185 = vld [vmem:[%s1 + $0x10] sm:$0xf]
      %v186 = vld [vmem:[%s1 + $0x14] sm:$0xf]
      %v187 = vld [vmem:[%s1 + $0x18] sm:$0xf]
      %v188 = vld [vmem:[%s1 + $0x1c] sm:$0xf]
      %v189 = vld [vmem:[%s1 + $0x20] sm:$0xf]
      %v190 = vld [vmem:[%s1 + $0x24] sm:$0xf]
      %v191 = vld [vmem:[%s1 + $0x28] sm:$0xf]
      %v192 = vld [vmem:[%s1 + $0x2c] sm:$0xf]
      %v193 = vld [vmem:[%s1 + $0x30] sm:$0xf]
      %v194 = vld [vmem:[%s1 + $0x34] sm:$0xf]
      %v195 = vld [vmem:[%s1 + $0x38] sm:$0xf]
      %v196 = vld [vmem:[%s1 + $0x3c] sm:$0xf]
      %v197 = vld [vmem:[%s1 + $0x40] sm:$0xf]
      %v198 = vld [vmem:[%s1 + $0x44] sm:$0xf]
      %v199 = vld [vmem:[%s2] sm:$0x1]
      %v200 = vld [vmem:[%s2 + $0x1] sm:$0x1]
      %v201 = vlaneseq
      %v202 = vshrl.u32 %v201, 7
      %v203 = vsub.s32 0, %v202
      %v204 = vrot.slane %v199, %v203
      %v207 = vunpack.c.l.b16 %v181
      %v208 = vunpack.c.l.b16 %v182
      %v209 = vpack.c.b16 %v208, %v207
      %vm211 = vcmask 130048
      %v213 = vsel %vm211, %v179, 0
      %v216 = vsel %vm211, %v180, 0
      %218 = vmatprep.subr.bf16.mxu0 0
      %219 = vmatpush1.bf16.msra.mxu0 0
      %220 = vmatprep.subr.bf16.mxu0 0
      %221 = vmatpush1.bf16.msra.mxu0 0
      %222 = vmatprep.subr.bf16.mxu0 0
      %223 = vmatpush1.bf16.msra.mxu0 0
      %224 = vmatprep.subr.bf16.mxu0 0
      %225 = vmatpush1.bf16.msra.mxu0 0
      %226 = vmatprep.subr.bf16.mxu0 0
      %227 = vmatpush1.bf16.msra.mxu0 0
      %228 = vmatprep.subr.bf16.mxu0 0
      %229 = vmatpush1.bf16.msra.mxu0 0
      %230 = vmatprep.subr.bf16.mxu0 0
      %231 = vmatpush1.bf16.msra.mxu0 0
      %232 = vmatprep.subr.bf16.mxu0 0
      %233 = vmatpush1.bf16.msra.mxu0 %v209
      %234 = vmatprep.subr.bf16.mxu0 0
      %235 = vmatpush2.bf16.msra.mxu0 0
      %236 = vmatprep.subr.bf16.mxu0 0
      %237 = vmatpush2.bf16.msra.mxu0 0
      %238 = vmatprep.subr.bf16.mxu0 0
      %239 = vmatpush2.bf16.msra.mxu0 0
      %240 = vmatprep.subr.bf16.mxu0 0
      %241 = vmatpush2.bf16.msra.mxu0 0
      %242 = vmatprep.subr.bf16.mxu0 0
      %243 = vmatpush2.bf16.msra.mxu0 0
      %244 = vmatprep.subr.bf16.mxu0 0
      %245 = vmatpush2.bf16.msra.mxu0 0
      %246 = vmatprep.subr.bf16.mxu0 0
      %247 = vmatpush2.bf16.msra.mxu0 0
      %248 = vmatprep.subr.bf16.mxu0 0
      %249 = vmatpush2.bf16.msra.mxu0 0
      %250 = vmatprep.mubr.bf16.mxu0 0
      %251 = vmatmul.mubr.bf16.gmra.mxu0 %v213
      %v252 = vpop.f32.mrf.mxu0
      %v253 = vadd.f32 %v204, %v252
      %v254 = vpop.f32.mrf.mxu0
      %v255 = vpop.f32.mrf.mxu0
      %v256 = vadd.f32 %v204, %v255
      %v257 = vpop.f32.mrf.mxu0
      %258 = vmatprep.mubr.bf16.mxu0 0
      %259 = vmatmul.mubr.bf16.gmra.mxu0 %v216
      %v260 = vpop.f32.mrf.mxu0
      %v261 = vadd.f32 %v204, %v260
      %v262 = vpop.f32.mrf.mxu0
      %v263 = vpop.f32.mrf.mxu0
      %v264 = vadd.f32 %v204, %v263
      %v265 = vpop.f32.mrf.mxu0
      %266 = vdwg.mxu0
      %v267 = vmax.f32 %v253, 0.0
      %v268 = vmax.f32 %v256, 0.0
      %v269 = vmax.f32 %v261, 0.0
      %v270 = vmax.f32 %v264, 0.0
      %v271 = vpack.c.bf16 %v268, %v267
      %v272 = vpack.c.bf16 %v270, %v269
      %v273 = vlaneseq
      %v274 = vshrl.u32 %v273, 7
      %v275 = vsub.s32 0, %v274
      %v276 = vrot.slane %v200, %v275
      %v293 = vunpack.c.l.b16 %v183
      %v294 = vunpack.c.l.b16 %v184
      %v295 = vunpack.c.l.b16 %v185
      %v296 = vunpack.c.l.b16 %v186
      %v297 = vunpack.c.l.b16 %v187
      %v298 = vunpack.c.l.b16 %v188
      %v299 = vunpack.c.l.b16 %v189
      %v300 = vunpack.c.l.b16 %v190
      %v301 = vunpack.c.l.b16 %v191
      %v302 = vunpack.c.l.b16 %v192
      %v303 = vunpack.c.l.b16 %v193
      %v304 = vunpack.c.l.b16 %v194
      %v305 = vunpack.c.l.b16 %v195
      %v306 = vunpack.c.l.b16 %v196
      %v307 = vunpack.c.l.b16 %v197
      %v308 = vunpack.c.l.b16 %v198
      %v309 = vpack.c.b16 %v294, %v293
      %v310 = vpack.c.b16 %v296, %v295
      %v311 = vpack.c.b16 %v298, %v297
      %v312 = vpack.c.b16 %v300, %v299
      %v313 = vpack.c.b16 %v302, %v301
      %v314 = vpack.c.b16 %v304, %v303
      %v315 = vpack.c.b16 %v306, %v305
      %v316 = vpack.c.b16 %v308, %v307
      %325 = vmatprep.subr.bf16.mxu0 0
      %326 = vmatpush1.bf16.msra.mxu0 %v316
      %327 = vmatprep.subr.bf16.mxu0 0
      %328 = vmatpush1.bf16.msra.mxu0 %v315
      %329 = vmatprep.subr.bf16.mxu0 0
      %330 = vmatpush1.bf16.msra.mxu0 %v314
      %331 = vmatprep.subr.bf16.mxu0 0
      %332 = vmatpush1.bf16.msra.mxu0 %v313
      %333 = vmatprep.subr.bf16.mxu0 0
      %334 = vmatpush1.bf16.msra.mxu0 %v312
      %335 = vmatprep.subr.bf16.mxu0 0
      %336 = vmatpush1.bf16.msra.mxu0 %v311
      %337 = vmatprep.subr.bf16.mxu0 0
      %338 = vmatpush1.bf16.msra.mxu0 %v310
      %339 = vmatprep.subr.bf16.mxu0 0
      %340 = vmatpush1.bf16.msra.mxu0 %v309
      %341 = vmatprep.subr.bf16.mxu0 0
      %342 = vmatpush2.bf16.msra.mxu0 0
      %343 = vmatprep.subr.bf16.mxu0 0
      %344 = vmatpush2.bf16.msra.mxu0 0
      %345 = vmatprep.subr.bf16.mxu0 0
      %346 = vmatpush2.bf16.msra.mxu0 0
      %347 = vmatprep.subr.bf16.mxu0 0
      %348 = vmatpush2.bf16.msra.mxu0 0
      %349 = vmatprep.subr.bf16.mxu0 0
      %350 = vmatpush2.bf16.msra.mxu0 0
      %351 = vmatprep.subr.bf16.mxu0 0
      %352 = vmatpush2.bf16.msra.mxu0 0
      %353 = vmatprep.subr.bf16.mxu0 0
      %354 = vmatpush2.bf16.msra.mxu0 0
      %355 = vmatprep.subr.bf16.mxu0 0
      %356 = vmatpush2.bf16.msra.mxu0 0
      %357 = vmatprep.mubr.bf16.mxu0 0
      %358 = vmatmul.mubr.bf16.gmra.mxu0 %v271
      %v359 = vpop.f32.mrf.mxu0
      %v360 = vadd.f32 %v276, %v359
      %v361 = vpop.f32.mrf.mxu0
      %v362 = vpop.f32.mrf.mxu0
      %v363 = vadd.f32 %v276, %v362
      %v364 = vpop.f32.mrf.mxu0
      %365 = vmatprep.mubr.bf16.mxu0 0
      %366 = vmatmul.mubr.bf16.gmra.mxu0 %v272
      %v367 = vpop.f32.mrf.mxu0
      %v368 = vadd.f32 %v276, %v367
      %v369 = vpop.f32.mrf.mxu0
      %v370 = vpop.f32.mrf.mxu0
      %v371 = vadd.f32 %v276, %v370
      %v372 = vpop.f32.mrf.mxu0
      %373 = vdwg.mxu0
      %vm374 = vcmask 31744
      %375 = vst.msk [vmem:[%s172] sm:$0xff] %vm374, %v360
      %376 = vst.msk [vmem:[%s172 + $0x8] sm:$0xff] %vm374, %v363
      %377 = vst.msk [vmem:[%s172 + $0x10] sm:$0xff] %vm374, %v368
      %378 = vst.msk [vmem:[%s172 + $0x18] sm:$0xff] %vm374, %v371
      %s379 = smul.u32 4, %s14
      %p380 = scmp.lt.s32.totalorder %s379, 7
      %s381 = scalar_select %p380, %s379, 7
      %s382 = smul.addr %s381, 8
      %s383 = scalar_lea.vmem %s3, %s382
      // Predicated region
      $region33: #{qnetwork_forward.1} parent=31 // pred_check
        %p384 = pneg %p100
      $region34: #{qnetwork_forward.1} parent=31 // pred_check_branch
        %386 = sbr.rel (%p384) target = $region36
      $region35: #{qnetwork_forward.1} parent=31 // pred_region
        %s387 = smul.u32 4, %s14
      $region36: #{qnetwork_forward.1} parent=31 // pred_fallthru
        _
    $region32: #{qnetwork_forward.1} parent=5 // pred_fallthru
      _
    %p388 = scmp.le.s32.totalorder 2, %s9
    // Predicated region
    $region37: #{qnetwork_forward.1} parent=5 // pred_check
      %p389 = pneg %p388
    $region38: #{qnetwork_forward.1} parent=5 // pred_check_branch
      %391 = sbr.rel (%p389) target = $region40
    $region39: #{qnetwork_forward.1} parent=5 // pred_region
      %s392 = ssub.s32 %s9, 2
      // Predicated region
      $region41: #{qnetwork_forward.1} parent=39 // pred_check
        %p393 = pneg %p106
      $region42: #{qnetwork_forward.1} parent=39 // pred_check_branch
        %395 = sbr.rel (%p393) target = $region44
      $region43: #{qnetwork_forward.1} parent=39 // pred_region
        %s396 = smul.u32 4, %s15
        %p397 = scmp.lt.s32.totalorder %s396, 7
        %s398 = scalar_select %p397, %s396, 7
        %s399 = smul.addr %s398, 8
        %s400 = scalar_lea.vmem %s3, %s399
      $region44: #{qnetwork_forward.1} parent=39 // pred_fallthru
        _
    $region40: #{qnetwork_forward.1} parent=5 // pred_fallthru
      _
  $region6: #{qnetwork_forward.1} parent=0 // loop_footer
    %s13 = sadd.s32 1, %s9
  $region7: #{qnetwork_forward.1} parent=0 // loop_footer_branch
    %8 = sbr.rel target = $region3
  $region8: #{qnetwork_forward.1} parent=0 // loop_exit
    _

</llo_original>
